<compile_context>
chip_gen: v7x
topology: tpu7x:2x2x1
jax: 0.10.0
libtpu: 0.0.40
codegen_flags: <defaults>
</compile_context>

<pallas_src>
import functools

import jax
import jax.numpy as jnp
from jax.experimental import pallas as pl
from jax.experimental.pallas import tpu as pltpu

RMS_EPS = 1e-6
_MXU_WIDTH = 256  # v6e/v7x MXU tile; block-diag fusion only helps when D < this.


# ---------------------------------------------------------------------------
# Kernels
# ---------------------------------------------------------------------------
def _fused_kernel(x_ref, w1_ref, b1_ref, w2_ref, b2_ref, g_ref, o_ref):
    """Block-diagonal fused path.

    x_ref:  (F, TN, D)   row tile of every feature (native dtype)
    w1/w2:  (FD, FD)     block-diagonal fused weights ([in, out] orientation)
    b1/b2:  (1, FD)      fused biases (f32)
    g_ref:  (1, FD)      fused RMSNorm gains (f32)
    o_ref:  (TN, FD)     output tile (feature blocks concatenated along lanes)
    """
    num_feats, _, feat_dim = x_ref.shape
    mxu_dtype = w1_ref.dtype

    # Assemble the concatenated (TN, F*D) row tile once (in-VMEM, no HBM pass).
    x_cat = jnp.concatenate([x_ref[f] for f in range(num_feats)], axis=-1)

    # MLP: Linear -> ReLU -> Linear.  One wide matmul each, f32 accumulation.
    h = jnp.dot(x_cat.astype(mxu_dtype), w1_ref[...],
                preferred_element_type=jnp.float32) + b1_ref[...]
    h = jnp.maximum(h, 0.0)
    y = jnp.dot(h.astype(mxu_dtype), w2_ref[...],
                preferred_element_type=jnp.float32) + b2_ref[...]

    # Residual (f32).
    r = x_cat.astype(jnp.float32) + y                        # (TN, FD)

    # Per-feature RMSNorm over each D-wide lane block (exact f32 reductions).
    blocks = []
    for f in range(num_feats):
        rb = r[:, f * feat_dim:(f + 1) * feat_dim]
        ms = jnp.mean(rb * rb, axis=-1, keepdims=True)
        blocks.append(rb * jax.lax.rsqrt(ms + RMS_EPS))
    out = jnp.concatenate(blocks, axis=-1) * g_ref[...]

    # Single full-width, lane-dense store.
    o_ref[...] = out.astype(o_ref.dtype)


def _per_feature_kernel(x_ref, w1_ref, b1_ref, w2_ref, b2_ref, g_ref, o_ref):
    """Per-feature fallback path (used when fused block-diag weights would be
    too large for VMEM, or D already fills the MXU).

    x_ref: (F, TN, D); w1/w2: (F, D, D); b1/b2/g: (F, D) f32; o: (TN, F*D).
    """
    num_feats = x_ref.shape[0]
    blocks = []
    for f in range(num_feats):
        x = x_ref[f]
        w1 = w1_ref[f]
        w2 = w2_ref[f]
        b1 = b1_ref[pl.ds(f, 1), :]
        b2 = b2_ref[pl.ds(f, 1), :]
        gg = g_ref[pl.ds(f, 1), :]
        h = jnp.dot(x.astype(w1.dtype), w1,
                    preferred_element_type=jnp.float32) + b1
        h = jnp.maximum(h, 0.0)
        y = jnp.dot(h.astype(w1.dtype), w2,
                    preferred_element_type=jnp.float32) + b2
        r = x.astype(jnp.float32) + y
        ms = jnp.mean(r * r, axis=-1, keepdims=True)
        blocks.append(r * jax.lax.rsqrt(ms + RMS_EPS) * gg)
    # Single full-width store (no per-feature masked column stores).
    o_ref[...] = jnp.concatenate(blocks, axis=-1).astype(o_ref.dtype)


# ---------------------------------------------------------------------------
# Tiling / sizing helpers
# ---------------------------------------------------------------------------
def _vmem_capacity_bytes():
    try:
        return int(pltpu.get_tpu_info().vmem_capacity_bytes)
    except Exception:
        return 64 * 1024 * 1024  # conservative (v7x-sized) fallback


def _pick_row_tile(n_rows, fused_dim, in_dtype_bytes, weight_bytes,
                   vmem_budget_bytes):
    """Largest legal row tile whose working set fits the VMEM budget."""
    # Minimum sublane tile per element size: 8 (f32), 16 (bf16), 32 (int8/fp8).
    sublane = {1: 32, 2: 16}.get(in_dtype_bytes, 8)
    # Per row: double-buffered x block + double-buffered out block (native
    # dtype), plus ~6 live f32 (TN, F*D) temporaries inside the kernel
    # (x_cat, h, y, r, normalized blocks, out).
    per_row = 4 * fused_dim * in_dtype_bytes + 6 * fused_dim * 4
    budget = max(vmem_budget_bytes - weight_bytes, 8 * per_row)
    tn = min(budget // per_row, 1024, n_rows)
    if tn >= n_rows:
        return int(n_rows)           # full dim is always a legal block shape
    tn = (tn // sublane) * sublane
    if tn < sublane:
        tn = min(sublane, n_rows)
    return int(tn)


# ---------------------------------------------------------------------------
# pallas_call wrapper
# ---------------------------------------------------------------------------
@functools.partial(
    jax.jit, static_argnames=("tn", "vmem_limit", "fused", "compute_dtype"))
def _run(features, w1, b1, w2, b2, g, *, tn, vmem_limit, fused, compute_dtype):
    num_feats, batch, seq, feat_dim = features.shape
    n_rows = batch * seq
    fused_dim = num_feats * feat_dim
    x = features.reshape(num_feats, n_rows, feat_dim)

    w_dtype = features.dtype if compute_dtype is None else jnp.dtype(compute_dtype)
    num_row_tiles = pl.cdiv(n_rows, tn)

    if fused:
        # Build exact block-diagonal fused weights (off-diagonal blocks = 0).
        eye = jnp.eye(num_feats, dtype=w1.dtype)
        w1_in = jnp.einsum("fg,fij->figj", eye, w1).reshape(
            fused_dim, fused_dim).astype(w_dtype)
        w2_in = jnp.einsum("fg,fij->figj", eye, w2).reshape(
            fused_dim, fused_dim).astype(w_dtype)
        b1_in = b1.reshape(1, fused_dim).astype(jnp.float32)
        b2_in = b2.reshape(1, fused_dim).astype(jnp.float32)
        g_in = g.reshape(1, fused_dim).astype(jnp.float32)
        kernel = _fused_kernel
        w_spec = pl.BlockSpec((fused_dim, fused_dim), lambda n: (0, 0))
        v_spec = pl.BlockSpec((1, fused_dim), lambda n: (0, 0))
    else:
        w1_in = w1.astype(w_dtype)
        w2_in = w2.astype(w_dtype)
        b1_in = b1.astype(jnp.float32)
        b2_in = b2.astype(jnp.float32)
        g_in = g.astype(jnp.float32)
        kernel = _per_feature_kernel
        w_spec = pl.BlockSpec((num_feats, feat_dim, feat_dim),
                              lambda n: (0, 0, 0))
        v_spec = pl.BlockSpec((num_feats, feat_dim), lambda n: (0, 0))

    out_nfd = pl.pallas_call(
        kernel,
        out_shape=jax.ShapeDtypeStruct((n_rows, fused_dim), features.dtype),
        grid_spec=pltpu.PrefetchScalarGridSpec(
            num_scalar_prefetch=0,
            grid=(num_row_tiles,),
            in_specs=[
                # Row-tiled activations; parameters have n-independent index
                # maps so they stay resident in VMEM across all row tiles.
                pl.BlockSpec((num_feats, tn, feat_dim), lambda n: (0, n, 0)),
                w_spec, v_spec, w_spec, v_spec, v_spec,
            ],
            # Output written directly in the concatenated [N, F*D] layout.
            out_specs=pl.BlockSpec((tn, fused_dim), lambda n: (n, 0)),
        ),
        compiler_params=pltpu.CompilerParams(
            # Row tiles are independent; "parallel" lets the runtime shard the
            # row axis across TensorCores on multi-TC parts (v7x).
            dimension_semantics=("parallel",),
            vmem_limit_bytes=vmem_limit,
        ),
    )(x, w1_in, b1_in, w2_in, b2_in, g_in)

    # Free reshape only — no transpose pass.
    return out_nfd.reshape(batch, seq, fused_dim)


def naive_norm_sequential_feature_aggregator(features_list, w1, b1, w2, b2, g,
                                             *, compute_dtype=None, tn=None):
    """features_list: sequence of F arrays [B, S, D] (or a stacked [F, B, S, D]).

    w1, w2: [F, D, D] per-feature linear weights in [in, out] orientation
            (y = x @ W + b, i.e. torch weight transposed); b1, b2, g: [F, D].
    Returns [B, S, F*D].  `compute_dtype` (e.g. jnp.bfloat16) optionally casts
    the MXU operands; accumulation / residual / RMSNorm stay f32.
    """
    features = jnp.stack(list(features_list), axis=0)   # (F, B, S, D)
    num_feats, batch, seq, feat_dim = features.shape
    n_rows = batch * seq
    fused_dim = num_feats * feat_dim

    if compute_dtype is not None:
        compute_dtype = jnp.dtype(compute_dtype).name
    w_bytes = (jnp.dtype(features.dtype).itemsize if compute_dtype is None
               else jnp.dtype(compute_dtype).itemsize)

    vmem_cap = _vmem_capacity_bytes()
    vmem_budget = int(vmem_cap * 0.45)   # ~28 MiB on v7x, ~57 MiB on v5e/v6e
    vmem_limit = int(vmem_cap * 0.75)    # ~48 MiB on v7x, ~96 MiB on v5e/v6e

    # Resident parameters are double-buffered by the pipeline -> charge 2x.
    fused_weight_bytes = 2 * (2 * fused_dim * fused_dim * w_bytes
                              + 3 * fused_dim * 4)
    per_feat_weight_bytes = 2 * (2 * num_feats * feat_dim * feat_dim * w_bytes
                                 + 3 * num_feats * feat_dim * 4)
    # Use the block-diag fused path when D under-fills the MXU and the fused
    # weights fit comfortably in the VMEM budget; otherwise per-feature GEMMs.
    fused = (feat_dim < _MXU_WIDTH) and (fused_weight_bytes <= vmem_budget // 2)
    weight_bytes = fused_weight_bytes if fused else per_feat_weight_bytes

    if tn is None:
        tn = _pick_row_tile(n_rows, fused_dim,
                            jnp.dtype(features.dtype).itemsize,
                            weight_bytes, vmem_budget)

    return _run(features, w1, b1, w2, b2, g, tn=int(tn),
                vmem_limit=int(vmem_limit), fused=bool(fused),
                compute_dtype=compute_dtype)


# ---------------------------------------------------------------------------
# Pure-JAX reference (matches the PyTorch forward)
# ---------------------------------------------------------------------------
def _reference(features_list, w1, b1, w2, b2, g):
    outs = []
    for i, x in enumerate(features_list):
        h = jnp.maximum(x @ w1[i] + b1[i], 0.0)
        y = h @ w2[i] + b2[i]
        r = x + y
        ms = jnp.mean(r * r, axis=-1, keepdims=True)
        outs.append(r * jax.lax.rsqrt(ms + RMS_EPS) * g[i])
    return jnp.concatenate(outs, axis=-1)


if __name__ == "__main__":
    # Small shapes consistent with the module's forward: a list of F feature
    # tensors, each [B, S, D].
    B, S, D, F = 2, 8, 32, 3

    key = jax.random.PRNGKey(0)
    k_feat, k_w1, k_b1, k_w2, k_b2 = jax.random.split(key, 5)

    features_list = [
        jax.random.normal(jax.random.fold_in(k_feat, i), (B, S, D),
                          dtype=jnp.float32)
        for i in range(F)
    ]

    scale = 1.0 / jnp.sqrt(jnp.float32(D))
    w1 = jax.random.uniform(k_w1, (F, D, D), jnp.float32, -scale, scale)
    b1 = jax.random.uniform(k_b1, (F, D), jnp.float32, -scale, scale)
    w2 = jax.random.uniform(k_w2, (F, D, D), jnp.float32, -scale, scale)
    b2 = jax.random.uniform(k_b2, (F, D), jnp.float32, -scale, scale)
    g = jnp.ones((F, D), dtype=jnp.float32)  # RMSNorm weight init (ones)

    out = naive_norm_sequential_feature_aggregator(
        features_list, w1, b1, w2, b2, g)
    out = jax.block_until_ready(out)

    ref = _reference(features_list, w1, b1, w2, b2, g)
    assert out.shape == (B, S, F * D), out.shape
    assert jnp.allclose(out, ref, atol=1e-5, rtol=1e-5), float(
        jnp.max(jnp.abs(out - ref)))

    print("KERNEL_OK")
</pallas_src>

<mosaic_0001>
module attributes {stable_mosaic.version = 11 : i64} {
  func.func @_fused_kernel(%arg0: i32, %arg1: memref<3x16x32xf32, #tpu.memory_space<vmem>>, %arg2: memref<96x96xf32, #tpu.memory_space<vmem>>, %arg3: memref<1x96xf32, #tpu.memory_space<vmem>>, %arg4: memref<96x96xf32, #tpu.memory_space<vmem>>, %arg5: memref<1x96xf32, #tpu.memory_space<vmem>>, %arg6: memref<1x96xf32, #tpu.memory_space<vmem>>, %arg7: memref<16x96xf32, #tpu.memory_space<vmem>>) attributes {dimension_semantics = [#tpu.dimension_semantics<parallel>], iteration_bounds = array<i64: 1>, scalar_prefetch = 0 : i64, scratch_operands = 0 : i64, tpu.core_type = #tpu.core_type<tc>, window_params = [{transform_indices = @transform_0, window_bounds = array<i64: 3, 16, 32>}, {pipeline_mode = #tpu.pipeline_mode<synchronous>, transform_indices = @transform_1, window_bounds = array<i64: 96, 96>}, {pipeline_mode = #tpu.pipeline_mode<synchronous>, transform_indices = @transform_2, window_bounds = array<i64: 1, 96>}, {pipeline_mode = #tpu.pipeline_mode<synchronous>, transform_indices = @transform_3, window_bounds = array<i64: 96, 96>}, {pipeline_mode = #tpu.pipeline_mode<synchronous>, transform_indices = @transform_4, window_bounds = array<i64: 1, 96>}, {pipeline_mode = #tpu.pipeline_mode<synchronous>, transform_indices = @transform_5, window_bounds = array<i64: 1, 96>}, {transform_indices = @transform_6, window_bounds = array<i64: 16, 96>}]} {
    %c0 = arith.constant 0 : index
    %c0_0 = arith.constant 0 : index
    %c0_1 = arith.constant 0 : index
    %0 = vector.load %arg1[%c0, %c0_0, %c0_1] : memref<3x16x32xf32, #tpu.memory_space<vmem>>, vector<1x16x32xf32>
    %1 = vector.shape_cast %0 : vector<1x16x32xf32> to vector<16x32xf32>
    %c1 = arith.constant 1 : index
    %c0_2 = arith.constant 0 : index
    %c0_3 = arith.constant 0 : index
    %2 = vector.load %arg1[%c1, %c0_2, %c0_3] : memref<3x16x32xf32, #tpu.memory_space<vmem>>, vector<1x16x32xf32>
    %3 = vector.shape_cast %2 : vector<1x16x32xf32> to vector<16x32xf32>
    %c2 = arith.constant 2 : index
    %c0_4 = arith.constant 0 : index
    %c0_5 = arith.constant 0 : index
    %4 = vector.load %arg1[%c2, %c0_4, %c0_5] : memref<3x16x32xf32, #tpu.memory_space<vmem>>, vector<1x16x32xf32>
    %5 = vector.shape_cast %4 : vector<1x16x32xf32> to vector<16x32xf32>
    %6 = tpu.concatenate %1, %3, %5 in 1 : vector<16x32xf32>, vector<16x32xf32>, vector<16x32xf32> -> vector<16x96xf32>
    %c0_6 = arith.constant 0 : index
    %c0_7 = arith.constant 0 : index
    %7 = vector.load %arg2[%c0_6, %c0_7] : memref<96x96xf32, #tpu.memory_space<vmem>>, vector<96x96xf32>
    %cst = arith.constant dense<0.000000e+00> : vector<16x96xf32>
    %8 = tpu.matmul %6, %7, %cst {dimension_numbers = #tpu.dot_dimension_numbers<[1], [0], [0], [1], [0, 0, 1, 1], [], []>} : vector<16x96xf32>, vector<96x96xf32>, vector<16x96xf32> -> vector<16x96xf32>
    %c0_8 = arith.constant 0 : index
    %c0_9 = arith.constant 0 : index
    %9 = vector.load %arg3[%c0_8, %c0_9] : memref<1x96xf32, #tpu.memory_space<vmem>>, vector<1x96xf32>
    %10 = vector.broadcast %9 : vector<1x96xf32> to vector<16x96xf32>
    %11 = arith.addf %8, %10 : vector<16x96xf32>
    %cst_10 = arith.constant 0.000000e+00 : f32
    %12 = vector.broadcast %cst_10 : f32 to vector<16x96xf32>
    %13 = arith.maximumf %11, %12 : vector<16x96xf32>
    %c0_11 = arith.constant 0 : index
    %c0_12 = arith.constant 0 : index
    %14 = vector.load %arg4[%c0_11, %c0_12] : memref<96x96xf32, #tpu.memory_space<vmem>>, vector<96x96xf32>
    %cst_13 = arith.constant dense<0.000000e+00> : vector<16x96xf32>
    %15 = tpu.matmul %13, %14, %cst_13 {dimension_numbers = #tpu.dot_dimension_numbers<[1], [0], [0], [1], [0, 0, 1, 1], [], []>} : vector<16x96xf32>, vector<96x96xf32>, vector<16x96xf32> -> vector<16x96xf32>
    %c0_14 = arith.constant 0 : index
    %c0_15 = arith.constant 0 : index
    %16 = vector.load %arg5[%c0_14, %c0_15] : memref<1x96xf32, #tpu.memory_space<vmem>>, vector<1x96xf32>
    %17 = vector.broadcast %16 : vector<1x96xf32> to vector<16x96xf32>
    %18 = arith.addf %15, %17 : vector<16x96xf32>
    %19 = arith.addf %6, %18 : vector<16x96xf32>
    %20 = vector.extract_strided_slice %19 {offsets = [0, 0], sizes = [16, 32], strides = [1, 1]} : vector<16x96xf32> to vector<16x32xf32>
    %21 = arith.mulf %20, %20 : vector<16x32xf32>
    %cst_16 = arith.constant dense<0.000000e+00> : vector<16xf32>
    %22 = vector.multi_reduction <add>, %21, %cst_16 [1] : vector<16x32xf32> to vector<16xf32>
    %23 = vector.shape_cast %22 : vector<16xf32> to vector<16x1xf32>
    %cst_17 = arith.constant 3.200000e+01 : f32
    %24 = vector.broadcast %cst_17 : f32 to vector<16x1xf32>
    %25 = arith.divf %23, %24 : vector<16x1xf32>
    %cst_18 = arith.constant 9.99999997E-7 : f32
    %26 = vector.broadcast %cst_18 : f32 to vector<16x1xf32>
    %27 = arith.addf %25, %26 : vector<16x1xf32>
    %28 = math.rsqrt %27 : vector<16x1xf32>
    %29 = vector.broadcast %28 : vector<16x1xf32> to vector<16x32xf32>
    %30 = arith.mulf %20, %29 : vector<16x32xf32>
    %31 = vector.extract_strided_slice %19 {offsets = [0, 32], sizes = [16, 32], strides = [1, 1]} : vector<16x96xf32> to vector<16x32xf32>
    %32 = arith.mulf %31, %31 : vector<16x32xf32>
    %cst_19 = arith.constant dense<0.000000e+00> : vector<16xf32>
    %33 = vector.multi_reduction <add>, %32, %cst_19 [1] : vector<16x32xf32> to vector<16xf32>
    %34 = vector.shape_cast %33 : vector<16xf32> to vector<16x1xf32>
    %cst_20 = arith.constant 3.200000e+01 : f32
    %35 = vector.broadcast %cst_20 : f32 to vector<16x1xf32>
    %36 = arith.divf %34, %35 : vector<16x1xf32>
    %cst_21 = arith.constant 9.99999997E-7 : f32
    %37 = vector.broadcast %cst_21 : f32 to vector<16x1xf32>
    %38 = arith.addf %36, %37 : vector<16x1xf32>
    %39 = math.rsqrt %38 : vector<16x1xf32>
    %40 = vector.broadcast %39 : vector<16x1xf32> to vector<16x32xf32>
    %41 = arith.mulf %31, %40 : vector<16x32xf32>
    %42 = vector.extract_strided_slice %19 {offsets = [0, 64], sizes = [16, 32], strides = [1, 1]} : vector<16x96xf32> to vector<16x32xf32>
    %43 = arith.mulf %42, %42 : vector<16x32xf32>
    %cst_22 = arith.constant dense<0.000000e+00> : vector<16xf32>
    %44 = vector.multi_reduction <add>, %43, %cst_22 [1] : vector<16x32xf32> to vector<16xf32>
    %45 = vector.shape_cast %44 : vector<16xf32> to vector<16x1xf32>
    %cst_23 = arith.constant 3.200000e+01 : f32
    %46 = vector.broadcast %cst_23 : f32 to vector<16x1xf32>
    %47 = arith.divf %45, %46 : vector<16x1xf32>
    %cst_24 = arith.constant 9.99999997E-7 : f32
    %48 = vector.broadcast %cst_24 : f32 to vector<16x1xf32>
    %49 = arith.addf %47, %48 : vector<16x1xf32>
    %50 = math.rsqrt %49 : vector<16x1xf32>
    %51 = vector.broadcast %50 : vector<16x1xf32> to vector<16x32xf32>
    %52 = arith.mulf %42, %51 : vector<16x32xf32>
    %53 = tpu.concatenate %30, %41, %52 in 1 : vector<16x32xf32>, vector<16x32xf32>, vector<16x32xf32> -> vector<16x96xf32>
    %c0_25 = arith.constant 0 : index
    %c0_26 = arith.constant 0 : index
    %54 = vector.load %arg6[%c0_25, %c0_26] : memref<1x96xf32, #tpu.memory_space<vmem>>, vector<1x96xf32>
    %55 = vector.broadcast %54 : vector<1x96xf32> to vector<16x96xf32>
    %56 = arith.mulf %53, %55 : vector<16x96xf32>
    %c0_27 = arith.constant 0 : index
    %c0_28 = arith.constant 0 : index
    %57 = vector.load %arg7[%c0_27, %c0_28] : memref<16x96xf32, #tpu.memory_space<vmem>>, vector<16x96xf32>
    tpu.vector_store %arg7[%c0_27, %c0_28], %56 {strides = array<i32>} : memref<16x96xf32, #tpu.memory_space<vmem>>, vector<16x96xf32>,
    return
  }
  func.func @transform_0(%arg0: i32) -> (i32, i32, i32) {
    %c0_i32 = arith.constant 0 : i32
    %c0_i32_0 = arith.constant 0 : i32
    %c0_i32_1 = arith.constant 0 : i32
    return %c0_i32, %arg0, %c0_i32_0 : i32, i32, i32
  }
  func.func @transform_1(%arg0: i32) -> (i32, i32) {
    %c0_i32 = arith.constant 0 : i32
    %c0_i32_0 = arith.constant 0 : i32
    %c0_i32_1 = arith.constant 0 : i32
    return %c0_i32, %c0_i32_0 : i32, i32
  }
  func.func @transform_2(%arg0: i32) -> (i32, i32) {
    %c0_i32 = arith.constant 0 : i32
    %c0_i32_0 = arith.constant 0 : i32
    %c0_i32_1 = arith.constant 0 : i32
    return %c0_i32, %c0_i32_0 : i32, i32
  }
  func.func @transform_3(%arg0: i32) -> (i32, i32) {
    %c0_i32 = arith.constant 0 : i32
    %c0_i32_0 = arith.constant 0 : i32
    %c0_i32_1 = arith.constant 0 : i32
    return %c0_i32, %c0_i32_0 : i32, i32
  }
  func.func @transform_4(%arg0: i32) -> (i32, i32) {
    %c0_i32 = arith.constant 0 : i32
    %c0_i32_0 = arith.constant 0 : i32
    %c0_i32_1 = arith.constant 0 : i32
    return %c0_i32, %c0_i32_0 : i32, i32
  }
  func.func @transform_5(%arg0: i32) -> (i32, i32) {
    %c0_i32 = arith.constant 0 : i32
    %c0_i32_0 = arith.constant 0 : i32
    %c0_i32_1 = arith.constant 0 : i32
    return %c0_i32, %c0_i32_0 : i32, i32
  }
  func.func @transform_6(%arg0: i32) -> (i32, i32) {
    %c0_i32 = arith.constant 0 : i32
    %c0_i32_0 = arith.constant 0 : i32
    return %arg0, %c0_i32 : i32, i32
  }
}

</mosaic_0001>

<llo_original>
// kernel: _run.1
$region0: #{_run.1}
  #allocation0 [shape = 'u32[]', space=smem, size = 0x4, offset = 0x4, fixed_abs, tag = 'smem constant byte address 0x4 - core index']
  #allocation1 [shape = 'u32[144,128]{1,0:T(1,128)}', space=vmem, size = 0x12000, scoped, tag = 'internal scratch']
  %s0 = inlined_call_operand.vmem [shape: f32[3,16,32], index: 0, kind: input, shape index: {}]
  %s1 = inlined_call_operand.vmem [shape: f32[96,96], index: 1, kind: input, shape index: {}]
  %s2 = inlined_call_operand.vmem [shape: f32[1,96], index: 2, kind: input, shape index: {}]
  %s3 = inlined_call_operand.vmem [shape: f32[96,96], index: 3, kind: input, shape index: {}]
  %s4 = inlined_call_operand.vmem [shape: f32[1,96], index: 4, kind: input, shape index: {}]
  %s5 = inlined_call_operand.vmem [shape: f32[1,96], index: 5, kind: input, shape index: {}]
  %s6 = inlined_call_operand.hbm [shape: f32[16,96], index: 6, kind: output, shape index: {}]
  %s7 = sld [smem:[#allocation0]]
  $region34: #{_run.1} parent=0
    _
  %s9 = ssub.s32 1, %s7
  %s10 = scalar_select 0, %s9, %s7
  $region1: #{_run.1} parent=0
    #allocation2 [shape = 'u8[8192]{0}', space=vmem, size = 0x2000, scoped, tag = 'output window, operand 0, single buffered']
    #allocation3 [shape = 's32[1]{0}', space=sflag, size = 0x4, scoped, tag = 'scoped memory for _run.1']
    %11 = vsyncpa [#allocation3], 0
    // Predicated region
    $region2: #{_run.1} parent=1 // pred_check
      _
    $region3: #{_run.1} parent=1 // pred_check_branch
      %13 = sbr.rel (0) target = $region5
    $region4: #{_run.1} parent=1 // pred_region
      _
    $region5: #{_run.1} parent=1 // pred_fallthru
      _
    // Predicated region
    $region6: #{_run.1} parent=1 // pred_check
      _
    $region7: #{_run.1} parent=1 // pred_check_branch
      %15 = sbr.rel (0) target = $region9
    $region8: #{_run.1} parent=1 // pred_region
      _
    $region9: #{_run.1} parent=1 // pred_fallthru
      _
    // Predicated region
    $region10: #{_run.1} parent=1 // pred_check
      _
    $region11: #{_run.1} parent=1 // pred_check_branch
      %17 = sbr.rel (0) target = $region13
    $region12: #{_run.1} parent=1 // pred_region
      _
    $region13: #{_run.1} parent=1 // pred_fallthru
      _
    // Predicated region
    $region14: #{_run.1} parent=1 // pred_check
      _
    $region15: #{_run.1} parent=1 // pred_check_branch
      %19 = sbr.rel (0) target = $region17
    $region16: #{_run.1} parent=1 // pred_region
      _
    $region17: #{_run.1} parent=1 // pred_fallthru
      _
    // Predicated region
    $region18: #{_run.1} parent=1 // pred_check
      _
    $region19: #{_run.1} parent=1 // pred_check_branch
      %21 = sbr.rel (0) target = $region21
    $region20: #{_run.1} parent=1 // pred_region
      _
    $region21: #{_run.1} parent=1 // pred_fallthru
      _
    // Predicated region
    $region22: #{_run.1} parent=1 // pred_check
      _
    $region23: #{_run.1} parent=1 // pred_check_branch
      %23 = sbr.rel (0) target = $region25
    $region24: #{_run.1} parent=1 // pred_region
      _
    $region25: #{_run.1} parent=1 // pred_fallthru
      _
    %v24 = vld [vmem:[%s0] sm:$0xff]
    %v25 = vld [vmem:[%s0 + $0x8] sm:$0xff]
    %s26 = scalar_lea.vmem %s0, 16
    %v27 = vld [vmem:[%s26] sm:$0xff]
    %v28 = vld [vmem:[%s26 + $0x8] sm:$0xff]
    %s29 = scalar_lea.vmem %s0, 32
    %v30 = vld [vmem:[%s29] sm:$0xff]
    %v31 = vld [vmem:[%s29 + $0x8] sm:$0xff]
    %34 = vrot.lane.b32.xlu0 %v27, 32
    %v35 = vpop.permute.xlu0 %34
    %36 = vrot.lane.b32.xlu0 %v28, 32
    %v37 = vpop.permute.xlu0 %36
    %42 = vrot.lane.b32.xlu0 %v30, 64
    %v43 = vpop.permute.xlu0 %42
    %44 = vrot.lane.b32.xlu0 %v31, 64
    %v45 = vpop.permute.xlu0 %44
    %vm48 = vcmask 261120
    %v49 = vsel %vm48, %v24, %v35
    %v50 = vsel %vm48, %v25, %v37
    %vm51 = vcmask 523264
    %v52 = vsel %vm51, %v49, %v43
    %v53 = vsel %vm51, %v50, %v45
    %v54 = vld [vmem:[%s1] sm:$0xff]
    %v55 = vld [vmem:[%s1 + $0x8] sm:$0xff]
    %v56 = vld [vmem:[%s1 + $0x10] sm:$0xff]
    %v57 = vld [vmem:[%s1 + $0x18] sm:$0xff]
    %v58 = vld [vmem:[%s1 + $0x20] sm:$0xff]
    %v59 = vld [vmem:[%s1 + $0x28] sm:$0xff]
    %v60 = vld [vmem:[%s1 + $0x30] sm:$0xff]
    %v61 = vld [vmem:[%s1 + $0x38] sm:$0xff]
    %v62 = vld [vmem:[%s1 + $0x40] sm:$0xff]
    %v63 = vld [vmem:[%s1 + $0x48] sm:$0xff]
    %v64 = vld [vmem:[%s1 + $0x50] sm:$0xff]
    %v65 = vld [vmem:[%s1 + $0x58] sm:$0xff]
    %v66 = vld [vmem:[%s2] sm:$0x1]
    %v68 = vlaneseq
    %v69 = vshrl.u32 %v68, 7
    %v70 = vsub.s32 0, %v69
    %v71 = vrot.slane %v66, %v70
    %vm73 = vcmask 785408
    %v75 = vsel %vm73, %v52, 0
    %v78 = vsel %vm73, %v53, 0
    %80 = vmatprep.subr.mxu0 0.0
    %81 = vmatpush1.msra.mxu0 %v54
    %82 = vmatprep.subr.mxu0 0.0
    %83 = vmatpush1.msra.mxu0 %v55
    %84 = vmatprep.subr.mxu0 0.0
    %85 = vmatpush1.msra.mxu0 %v56
    %86 = vmatprep.subr.mxu0 0.0
    %87 = vmatpush1.msra.mxu0 %v57
    %88 = vmatprep.subr.mxu0 0.0
    %89 = vmatpush1.msra.mxu0 %v58
    %90 = vmatprep.subr.mxu0 0.0
    %91 = vmatpush1.msra.mxu0 %v59
    %92 = vmatprep.subr.mxu0 0.0
    %93 = vmatpush1.msra.mxu0 %v60
    %94 = vmatprep.subr.mxu0 0.0
    %95 = vmatpush1.msra.mxu0 %v61
    %96 = vmatprep.subr.mxu0 0.0
    %97 = vmatpush1.msra.mxu0 %v62
    %98 = vmatprep.subr.mxu0 0.0
    %99 = vmatpush1.msra.mxu0 %v63
    %100 = vmatprep.subr.mxu0 0.0
    %101 = vmatpush1.msra.mxu0 %v64
    %102 = vmatprep.subr.mxu0 0.0
    %103 = vmatpush1.msra.mxu0 %v65
    %104 = vmatprep.subr.mxu0 0.0
    %105 = vmatpush1.msra.mxu0 0.0
    %106 = vmatprep.subr.mxu0 0.0
    %107 = vmatpush1.msra.mxu0 0.0
    %108 = vmatprep.subr.mxu0 0.0
    %109 = vmatpush1.msra.mxu0 0.0
    %110 = vmatprep.subr.mxu0 0.0
    %111 = vmatpush1.msra.mxu0 0.0
    %112 = vmatprep.subr.mxu0 0.0
    %113 = vmatpush1.msra.mxu0 0.0
    %114 = vmatprep.subr.mxu0 0.0
    %115 = vmatpush1.msra.mxu0 0.0
    %116 = vmatprep.subr.mxu0 0.0
    %117 = vmatpush1.msra.mxu0 0.0
    %118 = vmatprep.subr.mxu0 0.0
    %119 = vmatpush1.msra.mxu0 0.0
    %120 = vmatprep.subr.mxu0 0.0
    %121 = vmatpush1.msra.mxu0 0.0
    %122 = vmatprep.subr.mxu0 0.0
    %123 = vmatpush1.msra.mxu0 0.0
    %124 = vmatprep.subr.mxu0 0.0
    %125 = vmatpush1.msra.mxu0 0.0
    %126 = vmatprep.subr.mxu0 0.0
    %127 = vmatpush1.msra.mxu0 0.0
    %128 = vmatprep.subr.mxu0 0.0
    %129 = vmatpush1.msra.mxu0 0.0
    %130 = vmatprep.subr.mxu0 0.0
    %131 = vmatpush1.msra.mxu0 0.0
    %132 = vmatprep.subr.mxu0 0.0
    %133 = vmatpush1.msra.mxu0 0.0
    %134 = vmatprep.subr.mxu0 0.0
    %135 = vmatpush1.msra.mxu0 0.0
    %136 = vmatprep.subr.mxu0 0.0
    %137 = vmatpush1.msra.mxu0 0.0
    %138 = vmatprep.subr.mxu0 0.0
    %139 = vmatpush1.msra.mxu0 0.0
    %140 = vmatprep.subr.mxu0 0.0
    %141 = vmatpush1.msra.mxu0 0.0
    %142 = vmatprep.subr.mxu0 0.0
    %143 = vmatpush1.msra.mxu0 0.0
    %144 = vmatprep.mubr.f32.mxu0 0.0
    %145 = vmatmul.mubr.f32.gmra.mrb[0].mxu0 %v75
    %v146 = vpop.f32.mrb[0].mxu0
    %v147 = vadd.f32 %v71, %v146
    %v148 = vpop.f32.mrb[0].mxu0
    %149 = vmatprep.mubr.f32.mxu0 0.0
    %150 = vmatmul.mubr.f32.gmra.mrb[0].mxu0 %v78
    %v151 = vpop.f32.mrb[0].mxu0
    %v152 = vadd.f32 %v71, %v151
    %v153 = vpop.f32.mrb[0].mxu0
    %154 = vdwg.mxu0
    %v155 = vmax.f32 %v147, 0.0
    %v156 = vmax.f32 %v152, 0.0
    %v157 = vld [vmem:[%s3] sm:$0xff]
    %v158 = vld [vmem:[%s3 + $0x8] sm:$0xff]
    %v159 = vld [vmem:[%s3 + $0x10] sm:$0xff]
    %v160 = vld [vmem:[%s3 + $0x18] sm:$0xff]
    %v161 = vld [vmem:[%s3 + $0x20] sm:$0xff]
    %v162 = vld [vmem:[%s3 + $0x28] sm:$0xff]
    %v163 = vld [vmem:[%s3 + $0x30] sm:$0xff]
    %v164 = vld [vmem:[%s3 + $0x38] sm:$0xff]
    %v165 = vld [vmem:[%s3 + $0x40] sm:$0xff]
    %v166 = vld [vmem:[%s3 + $0x48] sm:$0xff]
    %v167 = vld [vmem:[%s3 + $0x50] sm:$0xff]
    %v168 = vld [vmem:[%s3 + $0x58] sm:$0xff]
    %v169 = vld [vmem:[%s4] sm:$0x1]
    %v171 = vlaneseq
    %v172 = vshrl.u32 %v171, 7
    %v173 = vsub.s32 0, %v172
    %v174 = vrot.slane %v169, %v173
    %v177 = vsel %vm73, %v155, 0
    %v180 = vsel %vm73, %v156, 0
    %182 = vmatprep.subr.mxu0 0.0
    %183 = vmatpush1.msra.mxu0 %v157
    %184 = vmatprep.subr.mxu0 0.0
    %185 = vmatpush1.msra.mxu0 %v158
    %186 = vmatprep.subr.mxu0 0.0
    %187 = vmatpush1.msra.mxu0 %v159
    %188 = vmatprep.subr.mxu0 0.0
    %189 = vmatpush1.msra.mxu0 %v160
    %190 = vmatprep.subr.mxu0 0.0
    %191 = vmatpush1.msra.mxu0 %v161
    %192 = vmatprep.subr.mxu0 0.0
    %193 = vmatpush1.msra.mxu0 %v162
    %194 = vmatprep.subr.mxu0 0.0
    %195 = vmatpush1.msra.mxu0 %v163
    %196 = vmatprep.subr.mxu0 0.0
    %197 = vmatpush1.msra.mxu0 %v164
    %198 = vmatprep.subr.mxu0 0.0
    %199 = vmatpush1.msra.mxu0 %v165
    %200 = vmatprep.subr.mxu0 0.0
    %201 = vmatpush1.msra.mxu0 %v166
    %202 = vmatprep.subr.mxu0 0.0
    %203 = vmatpush1.msra.mxu0 %v167
    %204 = vmatprep.subr.mxu0 0.0
    %205 = vmatpush1.msra.mxu0 %v168
    %206 = vmatprep.subr.mxu0 0.0
    %207 = vmatpush1.msra.mxu0 0.0
    %208 = vmatprep.subr.mxu0 0.0
    %209 = vmatpush1.msra.mxu0 0.0
    %210 = vmatprep.subr.mxu0 0.0
    %211 = vmatpush1.msra.mxu0 0.0
    %212 = vmatprep.subr.mxu0 0.0
    %213 = vmatpush1.msra.mxu0 0.0
    %214 = vmatprep.subr.mxu0 0.0
    %215 = vmatpush1.msra.mxu0 0.0
    %216 = vmatprep.subr.mxu0 0.0
    %217 = vmatpush1.msra.mxu0 0.0
    %218 = vmatprep.subr.mxu0 0.0
    %219 = vmatpush1.msra.mxu0 0.0
    %220 = vmatprep.subr.mxu0 0.0
    %221 = vmatpush1.msra.mxu0 0.0
    %222 = vmatprep.subr.mxu0 0.0
    %223 = vmatpush1.msra.mxu0 0.0
    %224 = vmatprep.subr.mxu0 0.0
    %225 = vmatpush1.msra.mxu0 0.0
    %226 = vmatprep.subr.mxu0 0.0
    %227 = vmatpush1.msra.mxu0 0.0
    %228 = vmatprep.subr.mxu0 0.0
    %229 = vmatpush1.msra.mxu0 0.0
    %230 = vmatprep.subr.mxu0 0.0
    %231 = vmatpush1.msra.mxu0 0.0
    %232 = vmatprep.subr.mxu0 0.0
    %233 = vmatpush1.msra.mxu0 0.0
    %234 = vmatprep.subr.mxu0 0.0
    %235 = vmatpush1.msra.mxu0 0.0
    %236 = vmatprep.subr.mxu0 0.0
    %237 = vmatpush1.msra.mxu0 0.0
    %238 = vmatprep.subr.mxu0 0.0
    %239 = vmatpush1.msra.mxu0 0.0
    %240 = vmatprep.subr.mxu0 0.0
    %241 = vmatpush1.msra.mxu0 0.0
    %242 = vmatprep.subr.mxu0 0.0
    %243 = vmatpush1.msra.mxu0 0.0
    %244 = vmatprep.subr.mxu0 0.0
    %245 = vmatpush1.msra.mxu0 0.0
    %246 = vmatprep.mubr.f32.mxu0 0.0
    %247 = vmatmul.mubr.f32.gmra.mrb[0].mxu0 %v177
    %v248 = vpop.f32.mrb[0].mxu0
    %v249 = vadd.f32 %v174, %v248
    %v250 = vpop.f32.mrb[0].mxu0
    %251 = vmatprep.mubr.f32.mxu0 0.0
    %252 = vmatmul.mubr.f32.gmra.mrb[0].mxu0 %v180
    %v253 = vpop.f32.mrb[0].mxu0
    %v254 = vadd.f32 %v174, %v253
    %v255 = vpop.f32.mrb[0].mxu0
    %256 = vdwg.mxu0
    %v257 = vadd.f32 %v52, %v249
    %v258 = vadd.f32 %v53, %v254
    %v259 = vmul.f32 %v257, %v257
    %v260 = vmul.f32 %v258, %v258
    %v261 = vsel %vm48, %v259, 0.0
    %262 = vadd.xlane.f32.xlu0 %v261
    %v263 = vpop.xlane.xlu0 %262
    %v264 = vsel %vm48, %v260, 0.0
    %265 = vadd.xlane.f32.xlu0 %v264
    %v266 = vpop.xlane.xlu0 %265
    %v267 = vrcp.pop 32.0
    %v268 = vmul.f32 %v263, %v267
    %v269 = vmul.f32 %v266, %v267
    %v270 = vadd.f32 %v268, 1e-06
    %v271 = vadd.f32 %v269, 1e-06
    %v272 = vrsqrt.pop %v270
    %v273 = vrsqrt.pop %v271
    %v274 = vmul.f32 %v257, %v272
    %v275 = vmul.f32 %v258, %v273
    %278 = vrot.lane.b32.xlu0 %v259, 96
    %v279 = vpop.permute.xlu0 %278
    %280 = vrot.lane.b32.xlu0 %v260, 96
    %v281 = vpop.permute.xlu0 %280
    %v284 = vsel %vm48, %v279, 0.0
    %285 = vadd.xlane.f32.xlu0 %v284
    %v286 = vpop.xlane.xlu0 %285
    %v287 = vsel %vm48, %v281, 0.0
    %288 = vadd.xlane.f32.xlu0 %v287
    %v289 = vpop.xlane.xlu0 %288
    %v290 = vmul.f32 %v286, %v267
    %v291 = vmul.f32 %v289, %v267
    %v292 = vadd.f32 %v290, 1e-06
    %v293 = vadd.f32 %v291, 1e-06
    %v294 = vrsqrt.pop %v292
    %v295 = vrsqrt.pop %v293
    %v296 = vmul.f32 %v257, %v294
    %v297 = vmul.f32 %v258, %v295
    %298 = vrot.lane.b32.xlu0 %v259, 64
    %v299 = vpop.permute.xlu0 %298
    %300 = vrot.lane.b32.xlu0 %v260, 64
    %v301 = vpop.permute.xlu0 %300
    %v304 = vsel %vm48, %v299, 0.0
    %305 = vadd.xlane.f32.xlu0 %v304
    %v306 = vpop.xlane.xlu0 %305
    %v307 = vsel %vm48, %v301, 0.0
    %308 = vadd.xlane.f32.xlu0 %v307
    %v309 = vpop.xlane.xlu0 %308
    %v310 = vmul.f32 %v306, %v267
    %v311 = vmul.f32 %v309, %v267
    %v312 = vadd.f32 %v310, 1e-06
    %v313 = vadd.f32 %v311, 1e-06
    %v314 = vrsqrt.pop %v312
    %v315 = vrsqrt.pop %v313
    %v316 = vmul.f32 %v257, %v314
    %v317 = vmul.f32 %v258, %v315
    %v318 = vsel %vm48, %v274, %v296
    %v319 = vsel %vm48, %v275, %v297
    %v320 = vsel %vm51, %v318, %v316
    %v321 = vsel %vm51, %v319, %v317
    %v322 = vld [vmem:[%s5] sm:$0x1]
    %v324 = vlaneseq
    %v325 = vshrl.u32 %v324, 7
    %v326 = vsub.s32 0, %v325
    %v327 = vrot.slane %v322, %v326
    %v329 = vmul.f32 %v320, %v327
    %v330 = vmul.f32 %v321, %v327
    %331 = vst.msk [vmem:[#allocation2] sm:$0xff] %vm73, %v329
    %332 = vst.msk [vmem:[#allocation2 + $0x8] sm:$0xff] %vm73, %v330
    // Predicated region
    $region26: #{_run.1} parent=1 // pred_check
      _
    $region27: #{_run.1} parent=1 // pred_check_branch
      %334 = sbr.rel (0) target = $region29
    $region28: #{_run.1} parent=1 // pred_region
      %s336 = ssub.s32 256, 256
      %337 = vsyncadd [#allocation3], %s336
      %s338 = sshll.u32 [#allocation2], 4
      %s339 = int_to_ptr.vmem [resolvable:$true] %s338
      %344 = dma.vmem_to_hbm [thread:$0]  %s339, 256, %s6, [#allocation3], 128, 128, 8
    $region29: #{_run.1} parent=1 // pred_fallthru
      _
    // Predicated region
    $region30: #{_run.1} parent=1 // pred_check
      _
    $region31: #{_run.1} parent=1 // pred_check_branch
      %346 = sbr.rel (0) target = $region33
    $region32: #{_run.1} parent=1 // pred_region
      %347 = dma.done [#allocation3], 256
    $region33: #{_run.1} parent=1 // pred_fallthru
      _
    %348 = vsyncpa [#allocation3], 1

</llo_original>
